<compile_context>
chip_gen: v6e
topology: v6e:2x2x1
jax: 0.10.0
libtpu: 0.0.40
codegen_flags: <defaults>
</compile_context>

<pallas_src>
import jax
import jax.numpy as jnp
from jax.experimental import pallas as pl
from jax.experimental.pallas import tpu as pltpu


def _round_up(n, m):
    return ((n + m - 1) // m) * m


def _nncritic_kernel(x_ref, w1_ref, b1_ref, w2_ref, b2_ref, w3_ref, b3_ref, o_ref):
    """One batch tile: out = relu(relu(x@W1+b1)@W2+b2) . w3_row + b3."""
    x = x_ref[...]

    # Layer 1: (TILE_B, IN) @ (IN, H1P) on the MXU; bf16 inputs, f32 accumulate.
    h1 = jnp.dot(x.astype(w1_ref.dtype), w1_ref[...],
                 preferred_element_type=jnp.float32) + b1_ref[...]
    h1 = jnp.maximum(h1, 0.0)                               # ReLU in f32 (VPU)

    # Layer 2: (TILE_B, H1P) @ (H1P, H2P) on the MXU.
    h2 = jnp.dot(h1.astype(w2_ref.dtype), w2_ref[...],
                 preferred_element_type=jnp.float32) + b2_ref[...]
    h2 = jnp.maximum(h2, 0.0)                               # ReLU in f32 (VPU)

    # Layer 3 (scalar critic head): VPU multiply + lane reduction (XLU) instead
    # of a 1-column MXU matmul -> keeps the MXU result path free.
    out = jnp.sum(h2 * w3_ref[...], axis=-1, keepdims=True) + b3_ref[...]
    o_ref[...] = out.astype(o_ref.dtype)


def nncritic_forward(x, prepared, *, tile_b=None):
    """x: (B, input_size) f32. `prepared`: output of prepare_params()."""
    w1, b1, w2, b2, w3r, b3 = (prepared["w1"], prepared["b1"], prepared["w2"],
                               prepared["b2"], prepared["w3row"], prepared["b3"])
    B, in_size = x.shape
    h1p = w1.shape[1]
    h2p = w2.shape[1]
    out_size = b3.shape[1]

    if tile_b is None:
        # 256 fills the MXU M dimension on v6e/v7x (128+ on v5e is fine too);
        # for tiny batches just round up to the f32 sublane multiple (8).
        tile_b = min(256, _round_up(B, 8))
    b_pad = _round_up(B, tile_b)
    if b_pad != B:
        x = jnp.pad(x, ((0, b_pad - B), (0, 0)))

    const = lambda shape: pl.BlockSpec(shape, lambda i: (0, 0))  # VMEM-resident

    out = pl.pallas_call(
        _nncritic_kernel,
        out_shape=jax.ShapeDtypeStruct((b_pad, out_size), jnp.float32),
        grid=(b_pad // tile_b,),
        in_specs=[
            pl.BlockSpec((tile_b, in_size), lambda i: (i, 0)),   # x: tiled over batch
            const((in_size, h1p)),                               # W1 (bf16)
            const((1, h1p)),                                     # b1 (f32)
            const((h1p, h2p)),                                   # W2 (bf16)
            const((1, h2p)),                                     # b2 (f32)
            const((out_size, h2p)),                              # W3 row (f32)
            const((1, out_size)),                                # b3 (f32)
        ],
        out_specs=pl.BlockSpec((tile_b, out_size), lambda i: (i, 0)),
        compiler_params=pltpu.CompilerParams(
            dimension_semantics=("parallel",)),   # shard batch across TCs on v7x
    )(x, w1, b1, w2, b2, w3r, b3)
    return out[:B]


def init_nncritic_params(key, input_size, output_size=1,
                         hidden_size_1=400, hidden_size_2=200):
    """torch.nn.Linear default init: U(-1/sqrt(fan_in), 1/sqrt(fan_in)).
    Weights stored transposed: (in_features, out_features)."""
    ks = jax.random.split(key, 6)

    def lin(kw, kb, fan_in, fan_out):
        bound = 1.0 / jnp.sqrt(jnp.float32(fan_in))
        w = jax.random.uniform(kw, (fan_in, fan_out), jnp.float32, -bound, bound)
        b = jax.random.uniform(kb, (1, fan_out), jnp.float32, -bound, bound)
        return w, b

    w1, b1 = lin(ks[0], ks[1], input_size, hidden_size_1)
    w2, b2 = lin(ks[2], ks[3], hidden_size_1, hidden_size_2)
    w3, b3 = lin(ks[4], ks[5], hidden_size_2, output_size)
    return {"w1": w1, "b1": b1, "w2": w2, "b2": b2, "w3": w3, "b3": b3}


def prepare_params(params, weight_dtype=jnp.bfloat16):
    """One-time layout prep: zero-pad hidden dims to lane multiples
    (400->512, 200->256), cast the big matmul weights to `weight_dtype`, and
    store the scalar head as a lane row (1, H2P) in f32 for the VPU path.
    Exact: padded h1/h2 columns are ReLU(0)=0 and the matching rows are 0."""
    w1, b1 = params["w1"], params["b1"]
    w2, b2 = params["w2"], params["b2"]
    w3, b3 = params["w3"], params["b3"]
    h1, h2, out_size = w1.shape[1], w2.shape[1], w3.shape[1]
    assert out_size == 1, "final-layer lane-reduction path assumes a scalar critic"
    h1p, h2p = _round_up(h1, 128), _round_up(h2, 128)

    w1p = jnp.pad(w1, ((0, 0), (0, h1p - h1))).astype(weight_dtype)
    b1p = jnp.pad(b1, ((0, 0), (0, h1p - h1)))                    # f32 bias
    w2p = jnp.pad(w2, ((0, h1p - h1), (0, h2p - h2))).astype(weight_dtype)
    b2p = jnp.pad(b2, ((0, 0), (0, h2p - h2)))                    # f32 bias
    w3row = jnp.pad(w3, ((0, h2p - h2), (0, 0))).T                # (1, h2p), f32
    return {"w1": w1p, "b1": b1p, "w2": w2p, "b2": b2p, "w3row": w3row, "b3": b3}


def nncritic_reference(x, params, weight_dtype=jnp.bfloat16):
    """Pure-JAX reference using the same compute dtypes as the kernel."""
    w1 = params["w1"].astype(weight_dtype)
    w2 = params["w2"].astype(weight_dtype)
    h1 = jnp.dot(x.astype(weight_dtype), w1,
                 preferred_element_type=jnp.float32) + params["b1"]
    h1 = jnp.maximum(h1, 0.0)
    h2 = jnp.dot(h1.astype(weight_dtype), w2,
                 preferred_element_type=jnp.float32) + params["b2"]
    h2 = jnp.maximum(h2, 0.0)
    return jnp.sum(h2 * params["w3"].T, axis=-1, keepdims=True) + params["b3"]


if __name__ == "__main__":
    key = jax.random.PRNGKey(0)
    k_param, k_x1, k_x2 = jax.random.split(key, 3)

    INPUT_SIZE = 16
    params = init_nncritic_params(k_param, INPUT_SIZE)
    prepared = prepare_params(params)            # bf16 weights, lane-padded dims

    # Small batch (module-scale demo): single grid step, TILE_B = 8.
    x_small = jax.random.normal(k_x1, (8, INPUT_SIZE), jnp.float32)
    out_small = jax.block_until_ready(nncritic_forward(x_small, prepared))
    ref_small = nncritic_reference(x_small, params)
    assert out_small.shape == (8, 1), out_small.shape
    assert jnp.allclose(out_small, ref_small, atol=5e-3, rtol=5e-3), "small-batch mismatch"

    # Larger ragged batch: exercises the batch grid (TILE_B=256, padded to 512).
    x_big = jax.random.normal(k_x2, (260, INPUT_SIZE), jnp.float32)
    out_big = jax.block_until_ready(nncritic_forward(x_big, prepared))
    ref_big = nncritic_reference(x_big, params)
    assert out_big.shape == (260, 1), out_big.shape
    assert jnp.allclose(out_big, ref_big, atol=5e-3, rtol=5e-3), "big-batch mismatch"

    print("KERNEL_OK")
</pallas_src>

<mosaic_0001>
module attributes {stable_mosaic.version = 11 : i64} {
  func.func @_nncritic_kernel(%arg0: i32, %arg1: memref<8x16xf32, #tpu.memory_space<vmem>>, %arg2: memref<16x512xbf16, #tpu.memory_space<vmem>>, %arg3: memref<1x512xf32, #tpu.memory_space<vmem>>, %arg4: memref<512x256xbf16, #tpu.memory_space<vmem>>, %arg5: memref<1x256xf32, #tpu.memory_space<vmem>>, %arg6: memref<1x256xf32, #tpu.memory_space<vmem>>, %arg7: memref<1x1xf32, #tpu.memory_space<vmem>>, %arg8: memref<8x1xf32, #tpu.memory_space<vmem>>) attributes {dimension_semantics = [#tpu.dimension_semantics<parallel>], iteration_bounds = array<i64: 1>, scalar_prefetch = 0 : i64, scratch_operands = 0 : i64, tpu.core_type = #tpu.core_type<tc>, window_params = [{transform_indices = @transform_0, window_bounds = array<i64: 8, 16>}, {pipeline_mode = #tpu.pipeline_mode<synchronous>, transform_indices = @transform_1, window_bounds = array<i64: 16, 512>}, {pipeline_mode = #tpu.pipeline_mode<synchronous>, transform_indices = @transform_2, window_bounds = array<i64: 1, 512>}, {pipeline_mode = #tpu.pipeline_mode<synchronous>, transform_indices = @transform_3, window_bounds = array<i64: 512, 256>}, {pipeline_mode = #tpu.pipeline_mode<synchronous>, transform_indices = @transform_4, window_bounds = array<i64: 1, 256>}, {pipeline_mode = #tpu.pipeline_mode<synchronous>, transform_indices = @transform_5, window_bounds = array<i64: 1, 256>}, {pipeline_mode = #tpu.pipeline_mode<synchronous>, transform_indices = @transform_6, window_bounds = array<i64: 1, 1>}, {transform_indices = @transform_7, window_bounds = array<i64: 8, 1>}]} {
    %c0 = arith.constant 0 : index
    %c0_0 = arith.constant 0 : index
    %0 = vector.load %arg1[%c0, %c0_0] : memref<8x16xf32, #tpu.memory_space<vmem>>, vector<8x16xf32>
    %1 = arith.truncf %0 : vector<8x16xf32> to vector<8x16xbf16>
    %c0_1 = arith.constant 0 : index
    %c0_2 = arith.constant 0 : index
    %2 = vector.load %arg2[%c0_1, %c0_2] : memref<16x512xbf16, #tpu.memory_space<vmem>>, vector<16x512xbf16>
    %cst = arith.constant dense<0.000000e+00> : vector<8x512xf32>
    %3 = tpu.matmul %1, %2, %cst {dimension_numbers = #tpu.dot_dimension_numbers<[1], [0], [0], [1], [0, 0, 1, 1], [], []>} : vector<8x16xbf16>, vector<16x512xbf16>, vector<8x512xf32> -> vector<8x512xf32>
    %c0_3 = arith.constant 0 : index
    %c0_4 = arith.constant 0 : index
    %4 = vector.load %arg3[%c0_3, %c0_4] : memref<1x512xf32, #tpu.memory_space<vmem>>, vector<1x512xf32>
    %5 = vector.broadcast %4 : vector<1x512xf32> to vector<8x512xf32>
    %6 = arith.addf %3, %5 : vector<8x512xf32>
    %cst_5 = arith.constant 0.000000e+00 : f32
    %7 = vector.broadcast %cst_5 : f32 to vector<8x512xf32>
    %8 = arith.maximumf %6, %7 : vector<8x512xf32>
    %9 = arith.truncf %8 : vector<8x512xf32> to vector<8x512xbf16>
    %c0_6 = arith.constant 0 : index
    %c0_7 = arith.constant 0 : index
    %10 = vector.load %arg4[%c0_6, %c0_7] : memref<512x256xbf16, #tpu.memory_space<vmem>>, vector<512x256xbf16>
    %cst_8 = arith.constant dense<0.000000e+00> : vector<8x256xf32>
    %11 = tpu.matmul %9, %10, %cst_8 {dimension_numbers = #tpu.dot_dimension_numbers<[1], [0], [0], [1], [0, 0, 1, 1], [], []>} : vector<8x512xbf16>, vector<512x256xbf16>, vector<8x256xf32> -> vector<8x256xf32>
    %c0_9 = arith.constant 0 : index
    %c0_10 = arith.constant 0 : index
    %12 = vector.load %arg5[%c0_9, %c0_10] : memref<1x256xf32, #tpu.memory_space<vmem>>, vector<1x256xf32>
    %13 = vector.broadcast %12 : vector<1x256xf32> to vector<8x256xf32>
    %14 = arith.addf %11, %13 : vector<8x256xf32>
    %cst_11 = arith.constant 0.000000e+00 : f32
    %15 = vector.broadcast %cst_11 : f32 to vector<8x256xf32>
    %16 = arith.maximumf %14, %15 : vector<8x256xf32>
    %c0_12 = arith.constant 0 : index
    %c0_13 = arith.constant 0 : index
    %17 = vector.load %arg6[%c0_12, %c0_13] : memref<1x256xf32, #tpu.memory_space<vmem>>, vector<1x256xf32>
    %18 = vector.broadcast %17 : vector<1x256xf32> to vector<8x256xf32>
    %19 = arith.mulf %16, %18 : vector<8x256xf32>
    %cst_14 = arith.constant dense<0.000000e+00> : vector<8xf32>
    %20 = vector.multi_reduction <add>, %19, %cst_14 [1] : vector<8x256xf32> to vector<8xf32>
    %21 = vector.shape_cast %20 : vector<8xf32> to vector<8x1xf32>
    %c0_15 = arith.constant 0 : index
    %c0_16 = arith.constant 0 : index
    %22 = vector.load %arg7[%c0_15, %c0_16] : memref<1x1xf32, #tpu.memory_space<vmem>>, vector<1x1xf32>
    %23 = vector.broadcast %22 : vector<1x1xf32> to vector<8x1xf32>
    %24 = arith.addf %21, %23 : vector<8x1xf32>
    %c0_17 = arith.constant 0 : index
    %c0_18 = arith.constant 0 : index
    %25 = vector.load %arg8[%c0_17, %c0_18] : memref<8x1xf32, #tpu.memory_space<vmem>>, vector<8x1xf32>
    tpu.vector_store %arg8[%c0_17, %c0_18], %24 {strides = array<i32>} : memref<8x1xf32, #tpu.memory_space<vmem>>, vector<8x1xf32>,
    return
  }
  func.func @transform_0(%arg0: i32) -> (i32, i32) {
    %c0_i32 = arith.constant 0 : i32
    %c0_i32_0 = arith.constant 0 : i32
    return %arg0, %c0_i32 : i32, i32
  }
  func.func @transform_1(%arg0: i32) -> (i32, i32) {
    %c0_i32 = arith.constant 0 : i32
    %c0_i32_0 = arith.constant 0 : i32
    %c0_i32_1 = arith.constant 0 : i32
    return %c0_i32, %c0_i32_0 : i32, i32
  }
  func.func @transform_2(%arg0: i32) -> (i32, i32) {
    %c0_i32 = arith.constant 0 : i32
    %c0_i32_0 = arith.constant 0 : i32
    %c0_i32_1 = arith.constant 0 : i32
    return %c0_i32, %c0_i32_0 : i32, i32
  }
  func.func @transform_3(%arg0: i32) -> (i32, i32) {
    %c0_i32 = arith.constant 0 : i32
    %c0_i32_0 = arith.constant 0 : i32
    %c0_i32_1 = arith.constant 0 : i32
    return %c0_i32, %c0_i32_0 : i32, i32
  }
  func.func @transform_4(%arg0: i32) -> (i32, i32) {
    %c0_i32 = arith.constant 0 : i32
    %c0_i32_0 = arith.constant 0 : i32
    %c0_i32_1 = arith.constant 0 : i32
    return %c0_i32, %c0_i32_0 : i32, i32
  }
  func.func @transform_5(%arg0: i32) -> (i32, i32) {
    %c0_i32 = arith.constant 0 : i32
    %c0_i32_0 = arith.constant 0 : i32
    %c0_i32_1 = arith.constant 0 : i32
    return %c0_i32, %c0_i32_0 : i32, i32
  }
  func.func @transform_6(%arg0: i32) -> (i32, i32) {
    %c0_i32 = arith.constant 0 : i32
    %c0_i32_0 = arith.constant 0 : i32
    %c0_i32_1 = arith.constant 0 : i32
    return %c0_i32, %c0_i32_0 : i32, i32
  }
  func.func @transform_7(%arg0: i32) -> (i32, i32) {
    %c0_i32 = arith.constant 0 : i32
    %c0_i32_0 = arith.constant 0 : i32
    return %arg0, %c0_i32 : i32, i32
  }
}

</mosaic_0001>

<llo_original>
// kernel: tpu_custom_call.1
$region0: #{tpu_custom_call.1}
  #allocation0 [shape = 'u32[]', space=smem, size = 0x4, offset = 0x4, fixed_abs, tag = 'smem constant byte address 0x4 - core index']
  #allocation1 [shape = 'u32[144,128]{1,0:T(1,128)}', space=vmem, size = 0x12000, scoped, tag = 'internal scratch']
  #allocation2 [shape = 'f32[1,1]{1,0:T(1,128)S(1)}', space=vmem, size = 0x200, scoped, tag = 'scoped memory for tpu_custom_call.1']
  %s0 = inlined_call_operand.hbm [shape: f32[8,16], index: 0, kind: input, shape index: {}]
  %s1 = inlined_call_operand.hbm [shape: bf16[16,512], index: 1, kind: input, shape index: {}]
  %s2 = inlined_call_operand.vmem [shape: f32[1,512], index: 2, kind: input, shape index: {}]
  %s3 = inlined_call_operand.hbm [shape: bf16[512,256], index: 3, kind: input, shape index: {}]
  %s4 = inlined_call_operand.vmem [shape: f32[1,256], index: 4, kind: input, shape index: {}]
  %s5 = inlined_call_operand.vmem [shape: f32[1,256], index: 5, kind: input, shape index: {}]
  %s6 = inlined_call_operand.<no memory space> [shape: f32[1,1], index: 6, kind: input, shape index: {}]
  %s7 = inlined_call_operand.vmem [shape: f32[8,1], index: 7, kind: output, shape index: {}]
  %s8 = sld [smem:[#allocation0]]
  $region50: #{tpu_custom_call.1} parent=0
    _
  %s10 = ssub.s32 1, %s8
  %s11 = scalar_select 0, %s10, %s8
  %v12 = vstv %s6
  %13 = vst [vmem:[#allocation2] sm:$0x1] %v12
  $region1: #{tpu_custom_call.1} parent=0
    #allocation3 [shape = 'u8[4096]{0}', space=vmem, size = 0x1000, scoped, tag = 'input window, operand 0, single buffered']
    #allocation4 [shape = 's32[1]{0}', space=sflag, size = 0x4, scoped, tag = 'scoped memory for tpu_custom_call.1']
    #allocation5 [shape = 'u8[16384]{0}', space=vmem, size = 0x4000, scoped, tag = 'input window, operand 1, single buffered']
    #allocation6 [shape = 's32[1]{0}', space=sflag, size = 0x4, scoped, tag = 'scoped memory for tpu_custom_call.1']
    #allocation7 [shape = 'u8[262144]{0}', space=vmem, size = 0x40000, scoped, tag = 'input window, operand 3, single buffered']
    %14 = vsyncpa [#allocation4], 0
    %15 = vsyncpa [#allocation6], 0
    // Predicated region
    $region2: #{tpu_custom_call.1} parent=1 // pred_check
      _
    $region3: #{tpu_custom_call.1} parent=1 // pred_check_branch
      %17 = sbr.rel (0) target = $region5
    $region4: #{tpu_custom_call.1} parent=1 // pred_region
      %s19 = ssub.s32 128, 128
      %20 = vsyncadd [#allocation4], %s19
      %s22 = sshll.u32 [#allocation3], 4
      %s23 = int_to_ptr.vmem [resolvable:$true] %s22
      %25 = dma.hbm_to_vmem [thread:$0]  %s0, 128, %s23, [#allocation4]
    $region5: #{tpu_custom_call.1} parent=1 // pred_fallthru
      _
    // Predicated region
    $region6: #{tpu_custom_call.1} parent=1 // pred_check
      _
    $region7: #{tpu_custom_call.1} parent=1 // pred_check_branch
      %27 = sbr.rel (0) target = $region9
    $region8: #{tpu_custom_call.1} parent=1 // pred_region
      %s29 = ssub.s32 512, 512
      %30 = vsyncadd [#allocation6], %s29
      %s31 = sshll.u32 [#allocation5], 4
      %s32 = int_to_ptr.vmem [resolvable:$true] %s31
      %37 = dma.hbm_to_vmem [thread:$0]  %s1, 512, %s32, [#allocation6], 256, 256, 16
    $region9: #{tpu_custom_call.1} parent=1 // pred_fallthru
      _
    // Predicated region
    $region10: #{tpu_custom_call.1} parent=1 // pred_check
      _
    $region11: #{tpu_custom_call.1} parent=1 // pred_check_branch
      %39 = sbr.rel (0) target = $region13
    $region12: #{tpu_custom_call.1} parent=1 // pred_region
      _
    $region13: #{tpu_custom_call.1} parent=1 // pred_fallthru
      _
    // Predicated region
    $region14: #{tpu_custom_call.1} parent=1 // pred_check
      _
    $region15: #{tpu_custom_call.1} parent=1 // pred_check_branch
      %41 = sbr.rel (0) target = $region17
    $region16: #{tpu_custom_call.1} parent=1 // pred_region
      %s43 = ssub.s32 8192, 8192
      %44 = vsyncadd [#allocation6], %s43
      %s45 = sshll.u32 [#allocation7], 4
      %s46 = int_to_ptr.vmem [resolvable:$true] %s45
      %51 = dma.hbm_to_vmem [thread:$0]  %s3, 8192, %s46, [#allocation6], 128, 128, 8
    $region17: #{tpu_custom_call.1} parent=1 // pred_fallthru
      _
    // Predicated region
    $region18: #{tpu_custom_call.1} parent=1 // pred_check
      _
    $region19: #{tpu_custom_call.1} parent=1 // pred_check_branch
      %53 = sbr.rel (0) target = $region21
    $region20: #{tpu_custom_call.1} parent=1 // pred_region
      _
    $region21: #{tpu_custom_call.1} parent=1 // pred_fallthru
      _
    // Predicated region
    $region22: #{tpu_custom_call.1} parent=1 // pred_check
      _
    $region23: #{tpu_custom_call.1} parent=1 // pred_check_branch
      %55 = sbr.rel (0) target = $region25
    $region24: #{tpu_custom_call.1} parent=1 // pred_region
      _
    $region25: #{tpu_custom_call.1} parent=1 // pred_fallthru
      _
    // Predicated region
    $region26: #{tpu_custom_call.1} parent=1 // pred_check
      _
    $region27: #{tpu_custom_call.1} parent=1 // pred_check_branch
      %57 = sbr.rel (0) target = $region29
    $region28: #{tpu_custom_call.1} parent=1 // pred_region
      _
    $region29: #{tpu_custom_call.1} parent=1 // pred_fallthru
      _
    // Predicated region
    $region30: #{tpu_custom_call.1} parent=1 // pred_check
      _
    $region31: #{tpu_custom_call.1} parent=1 // pred_check_branch
      %59 = sbr.rel (0) target = $region33
    $region32: #{tpu_custom_call.1} parent=1 // pred_region
      %60 = dma.done [#allocation4], 128
    $region33: #{tpu_custom_call.1} parent=1 // pred_fallthru
      _
    // Predicated region
    $region34: #{tpu_custom_call.1} parent=1 // pred_check
      _
    $region35: #{tpu_custom_call.1} parent=1 // pred_check_branch
      %62 = sbr.rel (0) target = $region37
    $region36: #{tpu_custom_call.1} parent=1 // pred_region
      %63 = dma.done [#allocation6], 512
    $region37: #{tpu_custom_call.1} parent=1 // pred_fallthru
      _
    // Predicated region
    $region38: #{tpu_custom_call.1} parent=1 // pred_check
      _
    $region39: #{tpu_custom_call.1} parent=1 // pred_check_branch
      %65 = sbr.rel (0) target = $region41
    $region40: #{tpu_custom_call.1} parent=1 // pred_region
      %66 = dma.done [#allocation6], 8192
    $region41: #{tpu_custom_call.1} parent=1 // pred_fallthru
      _
    %v68 = vld [vmem:[#allocation3] sm:$0xff]
    %v69 = vpack.c.bf16 %v68, %v68
    %v70 = vld [vmem:[#allocation5] sm:$0xff]
    %v71 = vld [vmem:[#allocation5 + $0x8] sm:$0xff]
    %v72 = vld [vmem:[#allocation5 + $0x10] sm:$0xff]
    %v73 = vld [vmem:[#allocation5 + $0x18] sm:$0xff]
    %v74 = vld [vmem:[%s2] sm:$0xf]
    %v76 = vlaneseq
    %v77 = vshrl.u32 %v76, 7
    %v78 = vsub.s32 0, %v77
    %v79 = vrot.slane %v74, %v78
    %v80 = vlaneseq
    %v81 = vshrl.u32 %v80, 7
    %v82 = vsub.s32 1, %v81
    %v83 = vrot.slane %v74, %v82
    %v84 = vlaneseq
    %v85 = vshrl.u32 %v84, 7
    %v86 = vsub.s32 2, %v85
    %v87 = vrot.slane %v74, %v86
    %v88 = vlaneseq
    %v89 = vshrl.u32 %v88, 7
    %v90 = vsub.s32 3, %v89
    %v91 = vrot.slane %v74, %v90
    %v100 = vunpack.c.l.b16 %v70
    %v101 = vunpack.c.h.b16 %v70
    %v102 = vunpack.c.l.b16 %v71
    %v103 = vunpack.c.h.b16 %v71
    %v104 = vunpack.c.l.b16 %v72
    %v105 = vunpack.c.h.b16 %v72
    %v106 = vunpack.c.l.b16 %v73
    %v107 = vunpack.c.h.b16 %v73
    %v108 = vpack.c.b16 %v104, %v100
    %v109 = vpack.c.b16 %v105, %v101
    %v110 = vpack.c.b16 %v106, %v102
    %v111 = vpack.c.b16 %v107, %v103
    %vm116 = vcmask 130048
    %v118 = vsel %vm116, %v69, 0
    %120 = vmatprep.subr.bf16.mxu0 0
    %121 = vmatpush1.bf16.msra.mxu0 0
    %122 = vmatprep.subr.bf16.mxu0 0
    %123 = vmatpush1.bf16.msra.mxu0 0
    %124 = vmatprep.subr.bf16.mxu0 0
    %125 = vmatpush1.bf16.msra.mxu0 0
    %126 = vmatprep.subr.bf16.mxu0 0
    %127 = vmatpush1.bf16.msra.mxu0 0
    %128 = vmatprep.subr.bf16.mxu0 0
    %129 = vmatpush1.bf16.msra.mxu0 0
    %130 = vmatprep.subr.bf16.mxu0 0
    %131 = vmatpush1.bf16.msra.mxu0 0
    %132 = vmatprep.subr.bf16.mxu0 0
    %133 = vmatpush1.bf16.msra.mxu0 0
    %134 = vmatprep.subr.bf16.mxu0 %v109
    %135 = vmatpush1.bf16.msra.mxu0 %v108
    %136 = vmatprep.subr.bf16.mxu0 0
    %137 = vmatpush2.bf16.msra.mxu0 0
    %138 = vmatprep.subr.bf16.mxu0 0
    %139 = vmatpush2.bf16.msra.mxu0 0
    %140 = vmatprep.subr.bf16.mxu0 0
    %141 = vmatpush2.bf16.msra.mxu0 0
    %142 = vmatprep.subr.bf16.mxu0 0
    %143 = vmatpush2.bf16.msra.mxu0 0
    %144 = vmatprep.subr.bf16.mxu0 0
    %145 = vmatpush2.bf16.msra.mxu0 0
    %146 = vmatprep.subr.bf16.mxu0 0
    %147 = vmatpush2.bf16.msra.mxu0 0
    %148 = vmatprep.subr.bf16.mxu0 0
    %149 = vmatpush2.bf16.msra.mxu0 0
    %150 = vmatprep.subr.bf16.mxu0 0
    %151 = vmatpush2.bf16.msra.mxu0 0
    %152 = vmatprep.mubr.bf16.mxu0 0
    %153 = vmatmul.mubr.bf16.gmra.mxu0 %v118
    %v154 = vpop.f32.mrf.mxu0
    %v155 = vadd.f32 %v79, %v154
    %v156 = vpop.f32.mrf.mxu0
    %v157 = vadd.f32 %v83, %v156
    %v158 = vpop.f32.mrf.mxu0
    %v159 = vpop.f32.mrf.mxu0
    %160 = vdwg.mxu0
    %161 = vmatprep.subr.bf16.mxu0 0
    %162 = vmatpush1.bf16.msra.mxu0 0
    %163 = vmatprep.subr.bf16.mxu0 0
    %164 = vmatpush1.bf16.msra.mxu0 0
    %165 = vmatprep.subr.bf16.mxu0 0
    %166 = vmatpush1.bf16.msra.mxu0 0
    %167 = vmatprep.subr.bf16.mxu0 0
    %168 = vmatpush1.bf16.msra.mxu0 0
    %169 = vmatprep.subr.bf16.mxu0 0
    %170 = vmatpush1.bf16.msra.mxu0 0
    %171 = vmatprep.subr.bf16.mxu0 0
    %172 = vmatpush1.bf16.msra.mxu0 0
    %173 = vmatprep.subr.bf16.mxu0 0
    %174 = vmatpush1.bf16.msra.mxu0 0
    %175 = vmatprep.subr.bf16.mxu0 %v111
    %176 = vmatpush1.bf16.msra.mxu0 %v110
    %177 = vmatprep.subr.bf16.mxu0 0
    %178 = vmatpush2.bf16.msra.mxu0 0
    %179 = vmatprep.subr.bf16.mxu0 0
    %180 = vmatpush2.bf16.msra.mxu0 0
    %181 = vmatprep.subr.bf16.mxu0 0
    %182 = vmatpush2.bf16.msra.mxu0 0
    %183 = vmatprep.subr.bf16.mxu0 0
    %184 = vmatpush2.bf16.msra.mxu0 0
    %185 = vmatprep.subr.bf16.mxu0 0
    %186 = vmatpush2.bf16.msra.mxu0 0
    %187 = vmatprep.subr.bf16.mxu0 0
    %188 = vmatpush2.bf16.msra.mxu0 0
    %189 = vmatprep.subr.bf16.mxu0 0
    %190 = vmatpush2.bf16.msra.mxu0 0
    %191 = vmatprep.subr.bf16.mxu0 0
    %192 = vmatpush2.bf16.msra.mxu0 0
    %193 = vmatprep.mubr.bf16.mxu0 0
    %194 = vmatmul.mubr.bf16.gmra.mxu0 %v118
    %v195 = vpop.f32.mrf.mxu0
    %v196 = vadd.f32 %v87, %v195
    %v197 = vpop.f32.mrf.mxu0
    %v198 = vadd.f32 %v91, %v197
    %v199 = vpop.f32.mrf.mxu0
    %v200 = vpop.f32.mrf.mxu0
    %201 = vdwg.mxu0
    %v202 = vmax.f32 %v155, 0.0
    %v203 = vmax.f32 %v157, 0.0
    %v204 = vmax.f32 %v196, 0.0
    %v205 = vmax.f32 %v198, 0.0
    %v206 = vpack.c.bf16 %v202, %v202
    %v207 = vpack.c.bf16 %v203, %v203
    %v208 = vpack.c.bf16 %v204, %v204
    %v209 = vpack.c.bf16 %v205, %v205
    %v210 = vld [vmem:[#allocation7] sm:$0xff]
    %v211 = vld [vmem:[#allocation7 + $0x8] sm:$0xff]
    %v212 = vld [vmem:[#allocation7 + $0x10] sm:$0xff]
    %v213 = vld [vmem:[#allocation7 + $0x18] sm:$0xff]
    %v214 = vld [vmem:[#allocation7 + $0x20] sm:$0xff]
    %v215 = vld [vmem:[#allocation7 + $0x28] sm:$0xff]
    %v216 = vld [vmem:[#allocation7 + $0x30] sm:$0xff]
    %v217 = vld [vmem:[#allocation7 + $0x38] sm:$0xff]
    %v218 = vld [vmem:[#allocation7 + $0x40] sm:$0xff]
    %v219 = vld [vmem:[#allocation7 + $0x48] sm:$0xff]
    %v220 = vld [vmem:[#allocation7 + $0x50] sm:$0xff]
    %v221 = vld [vmem:[#allocation7 + $0x58] sm:$0xff]
    %v222 = vld [vmem:[#allocation7 + $0x60] sm:$0xff]
    %v223 = vld [vmem:[#allocation7 + $0x68] sm:$0xff]
    %v224 = vld [vmem:[#allocation7 + $0x70] sm:$0xff]
    %v225 = vld [vmem:[#allocation7 + $0x78] sm:$0xff]
    %v226 = vld [vmem:[#allocation7 + $0x80] sm:$0xff]
    %v227 = vld [vmem:[#allocation7 + $0x88] sm:$0xff]
    %v228 = vld [vmem:[#allocation7 + $0x90] sm:$0xff]
    %v229 = vld [vmem:[#allocation7 + $0x98] sm:$0xff]
    %v230 = vld [vmem:[#allocation7 + $0xa0] sm:$0xff]
    %v231 = vld [vmem:[#allocation7 + $0xa8] sm:$0xff]
    %v232 = vld [vmem:[#allocation7 + $0xb0] sm:$0xff]
    %v233 = vld [vmem:[#allocation7 + $0xb8] sm:$0xff]
    %v234 = vld [vmem:[#allocation7 + $0xc0] sm:$0xff]
    %v235 = vld [vmem:[#allocation7 + $0xc8] sm:$0xff]
    %v236 = vld [vmem:[#allocation7 + $0xd0] sm:$0xff]
    %v237 = vld [vmem:[#allocation7 + $0xd8] sm:$0xff]
    %v238 = vld [vmem:[#allocation7 + $0xe0] sm:$0xff]
    %v239 = vld [vmem:[#allocation7 + $0xe8] sm:$0xff]
    %v240 = vld [vmem:[#allocation7 + $0xf0] sm:$0xff]
    %v241 = vld [vmem:[#allocation7 + $0xf8] sm:$0xff]
    %v242 = vld [vmem:[#allocation7 + $0x100] sm:$0xff]
    %v243 = vld [vmem:[#allocation7 + $0x108] sm:$0xff]
    %v244 = vld [vmem:[#allocation7 + $0x110] sm:$0xff]
    %v245 = vld [vmem:[#allocation7 + $0x118] sm:$0xff]
    %v246 = vld [vmem:[#allocation7 + $0x120] sm:$0xff]
    %v247 = vld [vmem:[#allocation7 + $0x128] sm:$0xff]
    %v248 = vld [vmem:[#allocation7 + $0x130] sm:$0xff]
    %v249 = vld [vmem:[#allocation7 + $0x138] sm:$0xff]
    %v250 = vld [vmem:[#allocation7 + $0x140] sm:$0xff]
    %v251 = vld [vmem:[#allocation7 + $0x148] sm:$0xff]
    %v252 = vld [vmem:[#allocation7 + $0x150] sm:$0xff]
    %v253 = vld [vmem:[#allocation7 + $0x158] sm:$0xff]
    %v254 = vld [vmem:[#allocation7 + $0x160] sm:$0xff]
    %v255 = vld [vmem:[#allocation7 + $0x168] sm:$0xff]
    %v256 = vld [vmem:[#allocation7 + $0x170] sm:$0xff]
    %v257 = vld [vmem:[#allocation7 + $0x178] sm:$0xff]
    %v258 = vld [vmem:[#allocation7 + $0x180] sm:$0xff]
    %v259 = vld [vmem:[#allocation7 + $0x188] sm:$0xff]
    %v260 = vld [vmem:[#allocation7 + $0x190] sm:$0xff]
    %v261 = vld [vmem:[#allocation7 + $0x198] sm:$0xff]
    %v262 = vld [vmem:[#allocation7 + $0x1a0] sm:$0xff]
    %v263 = vld [vmem:[#allocation7 + $0x1a8] sm:$0xff]
    %v264 = vld [vmem:[#allocation7 + $0x1b0] sm:$0xff]
    %v265 = vld [vmem:[#allocation7 + $0x1b8] sm:$0xff]
    %v266 = vld [vmem:[#allocation7 + $0x1c0] sm:$0xff]
    %v267 = vld [vmem:[#allocation7 + $0x1c8] sm:$0xff]
    %v268 = vld [vmem:[#allocation7 + $0x1d0] sm:$0xff]
    %v269 = vld [vmem:[#allocation7 + $0x1d8] sm:$0xff]
    %v270 = vld [vmem:[#allocation7 + $0x1e0] sm:$0xff]
    %v271 = vld [vmem:[#allocation7 + $0x1e8] sm:$0xff]
    %v272 = vld [vmem:[#allocation7 + $0x1f0] sm:$0xff]
    %v273 = vld [vmem:[#allocation7 + $0x1f8] sm:$0xff]
    %v274 = vld [vmem:[%s4] sm:$0x3]
    %v276 = vlaneseq
    %v277 = vshrl.u32 %v276, 7
    %v278 = vsub.s32 0, %v277
    %v279 = vrot.slane %v274, %v278
    %v280 = vlaneseq
    %v281 = vshrl.u32 %v280, 7
    %v282 = vsub.s32 1, %v281
    %v283 = vrot.slane %v274, %v282
    %v350 = vunpack.c.l.b16 %v210
    %v351 = vunpack.c.h.b16 %v210
    %v352 = vunpack.c.l.b16 %v211
    %v353 = vunpack.c.h.b16 %v211
    %v354 = vunpack.c.l.b16 %v212
    %v355 = vunpack.c.h.b16 %v212
    %v356 = vunpack.c.l.b16 %v213
    %v357 = vunpack.c.h.b16 %v213
    %v358 = vunpack.c.l.b16 %v214
    %v359 = vunpack.c.h.b16 %v214
    %v360 = vunpack.c.l.b16 %v215
    %v361 = vunpack.c.h.b16 %v215
    %v362 = vunpack.c.l.b16 %v216
    %v363 = vunpack.c.h.b16 %v216
    %v364 = vunpack.c.l.b16 %v217
    %v365 = vunpack.c.h.b16 %v217
    %v366 = vunpack.c.l.b16 %v218
    %v367 = vunpack.c.h.b16 %v218
    %v368 = vunpack.c.l.b16 %v219
    %v369 = vunpack.c.h.b16 %v219
    %v370 = vunpack.c.l.b16 %v220
    %v371 = vunpack.c.h.b16 %v220
    %v372 = vunpack.c.l.b16 %v221
    %v373 = vunpack.c.h.b16 %v221
    %v374 = vunpack.c.l.b16 %v222
    %v375 = vunpack.c.h.b16 %v222
    %v376 = vunpack.c.l.b16 %v223
    %v377 = vunpack.c.h.b16 %v223
    %v378 = vunpack.c.l.b16 %v224
    %v379 = vunpack.c.h.b16 %v224
    %v380 = vunpack.c.l.b16 %v225
    %v381 = vunpack.c.h.b16 %v225
    %v382 = vunpack.c.l.b16 %v226
    %v383 = vunpack.c.h.b16 %v226
    %v384 = vunpack.c.l.b16 %v227
    %v385 = vunpack.c.h.b16 %v227
    %v386 = vunpack.c.l.b16 %v228
    %v387 = vunpack.c.h.b16 %v228
    %v388 = vunpack.c.l.b16 %v229
    %v389 = vunpack.c.h.b16 %v229
    %v390 = vunpack.c.l.b16 %v230
    %v391 = vunpack.c.h.b16 %v230
    %v392 = vunpack.c.l.b16 %v231
    %v393 = vunpack.c.h.b16 %v231
    %v394 = vunpack.c.l.b16 %v232
    %v395 = vunpack.c.h.b16 %v232
    %v396 = vunpack.c.l.b16 %v233
    %v397 = vunpack.c.h.b16 %v233
    %v398 = vunpack.c.l.b16 %v234
    %v399 = vunpack.c.h.b16 %v234
    %v400 = vunpack.c.l.b16 %v235
    %v401 = vunpack.c.h.b16 %v235
    %v402 = vunpack.c.l.b16 %v236
    %v403 = vunpack.c.h.b16 %v236
    %v404 = vunpack.c.l.b16 %v237
    %v405 = vunpack.c.h.b16 %v237
    %v406 = vunpack.c.l.b16 %v238
    %v407 = vunpack.c.h.b16 %v238
    %v408 = vunpack.c.l.b16 %v239
    %v409 = vunpack.c.h.b16 %v239
    %v410 = vunpack.c.l.b16 %v240
    %v411 = vunpack.c.h.b16 %v240
    %v412 = vunpack.c.l.b16 %v241
    %v413 = vunpack.c.h.b16 %v241
    %v414 = vunpack.c.l.b16 %v242
    %v415 = vunpack.c.h.b16 %v242
    %v416 = vunpack.c.l.b16 %v243
    %v417 = vunpack.c.h.b16 %v243
    %v418 = vunpack.c.l.b16 %v244
    %v419 = vunpack.c.h.b16 %v244
    %v420 = vunpack.c.l.b16 %v245
    %v421 = vunpack.c.h.b16 %v245
    %v422 = vunpack.c.l.b16 %v246
    %v423 = vunpack.c.h.b16 %v246
    %v424 = vunpack.c.l.b16 %v247
    %v425 = vunpack.c.h.b16 %v247
    %v426 = vunpack.c.l.b16 %v248
    %v427 = vunpack.c.h.b16 %v248
    %v428 = vunpack.c.l.b16 %v249
    %v429 = vunpack.c.h.b16 %v249
    %v430 = vunpack.c.l.b16 %v250
    %v431 = vunpack.c.h.b16 %v250
    %v432 = vunpack.c.l.b16 %v251
    %v433 = vunpack.c.h.b16 %v251
    %v434 = vunpack.c.l.b16 %v252
    %v435 = vunpack.c.h.b16 %v252
    %v436 = vunpack.c.l.b16 %v253
    %v437 = vunpack.c.h.b16 %v253
    %v438 = vunpack.c.l.b16 %v254
    %v439 = vunpack.c.h.b16 %v254
    %v440 = vunpack.c.l.b16 %v255
    %v441 = vunpack.c.h.b16 %v255
    %v442 = vunpack.c.l.b16 %v256
    %v443 = vunpack.c.h.b16 %v256
    %v444 = vunpack.c.l.b16 %v257
    %v445 = vunpack.c.h.b16 %v257
    %v446 = vunpack.c.l.b16 %v258
    %v447 = vunpack.c.h.b16 %v258
    %v448 = vunpack.c.l.b16 %v259
    %v449 = vunpack.c.h.b16 %v259
    %v450 = vunpack.c.l.b16 %v260
    %v451 = vunpack.c.h.b16 %v260
    %v452 = vunpack.c.l.b16 %v261
    %v453 = vunpack.c.h.b16 %v261
    %v454 = vunpack.c.l.b16 %v262
    %v455 = vunpack.c.h.b16 %v262
    %v456 = vunpack.c.l.b16 %v263
    %v457 = vunpack.c.h.b16 %v263
    %v458 = vunpack.c.l.b16 %v264
    %v459 = vunpack.c.h.b16 %v264
    %v460 = vunpack.c.l.b16 %v265
    %v461 = vunpack.c.h.b16 %v265
    %v462 = vunpack.c.l.b16 %v266
    %v463 = vunpack.c.h.b16 %v266
    %v464 = vunpack.c.l.b16 %v267
    %v465 = vunpack.c.h.b16 %v267
    %v466 = vunpack.c.l.b16 %v268
    %v467 = vunpack.c.h.b16 %v268
    %v468 = vunpack.c.l.b16 %v269
    %v469 = vunpack.c.h.b16 %v269
    %v470 = vunpack.c.l.b16 %v270
    %v471 = vunpack.c.h.b16 %v270
    %v472 = vunpack.c.l.b16 %v271
    %v473 = vunpack.c.h.b16 %v271
    %v474 = vunpack.c.l.b16 %v272
    %v475 = vunpack.c.h.b16 %v272
    %v476 = vunpack.c.l.b16 %v273
    %v477 = vunpack.c.h.b16 %v273
    %v478 = vpack.c.b16 %v352, %v350
    %v479 = vpack.c.b16 %v353, %v351
    %v480 = vpack.c.b16 %v356, %v354
    %v481 = vpack.c.b16 %v357, %v355
    %v482 = vpack.c.b16 %v360, %v358
    %v483 = vpack.c.b16 %v361, %v359
    %v484 = vpack.c.b16 %v364, %v362
    %v485 = vpack.c.b16 %v365, %v363
    %v486 = vpack.c.b16 %v368, %v366
    %v487 = vpack.c.b16 %v369, %v367
    %v488 = vpack.c.b16 %v372, %v370
    %v489 = vpack.c.b16 %v373, %v371
    %v490 = vpack.c.b16 %v376, %v374
    %v491 = vpack.c.b16 %v377, %v375
    %v492 = vpack.c.b16 %v380, %v378
    %v493 = vpack.c.b16 %v381, %v379
    %v494 = vpack.c.b16 %v384, %v382
    %v495 = vpack.c.b16 %v385, %v383
    %v496 = vpack.c.b16 %v388, %v386
    %v497 = vpack.c.b16 %v389, %v387
    %v498 = vpack.c.b16 %v392, %v390
    %v499 = vpack.c.b16 %v393, %v391
    %v500 = vpack.c.b16 %v396, %v394
    %v501 = vpack.c.b16 %v397, %v395
    %v502 = vpack.c.b16 %v400, %v398
    %v503 = vpack.c.b16 %v401, %v399
    %v504 = vpack.c.b16 %v404, %v402
    %v505 = vpack.c.b16 %v405, %v403
    %v506 = vpack.c.b16 %v408, %v406
    %v507 = vpack.c.b16 %v409, %v407
    %v508 = vpack.c.b16 %v412, %v410
    %v509 = vpack.c.b16 %v413, %v411
    %v510 = vpack.c.b16 %v416, %v414
    %v511 = vpack.c.b16 %v417, %v415
    %v512 = vpack.c.b16 %v420, %v418
    %v513 = vpack.c.b16 %v421, %v419
    %v514 = vpack.c.b16 %v424, %v422
    %v515 = vpack.c.b16 %v425, %v423
    %v516 = vpack.c.b16 %v428, %v426
    %v517 = vpack.c.b16 %v429, %v427
    %v518 = vpack.c.b16 %v432, %v430
    %v519 = vpack.c.b16 %v433, %v431
    %v520 = vpack.c.b16 %v436, %v434
    %v521 = vpack.c.b16 %v437, %v435
    %v522 = vpack.c.b16 %v440, %v438
    %v523 = vpack.c.b16 %v441, %v439
    %v524 = vpack.c.b16 %v444, %v442
    %v525 = vpack.c.b16 %v445, %v443
    %v526 = vpack.c.b16 %v448, %v446
    %v527 = vpack.c.b16 %v449, %v447
    %v528 = vpack.c.b16 %v452, %v450
    %v529 = vpack.c.b16 %v453, %v451
    %v530 = vpack.c.b16 %v456, %v454
    %v531 = vpack.c.b16 %v457, %v455
    %v532 = vpack.c.b16 %v460, %v458
    %v533 = vpack.c.b16 %v461, %v459
    %v534 = vpack.c.b16 %v464, %v462
    %v535 = vpack.c.b16 %v465, %v463
    %v536 = vpack.c.b16 %v468, %v466
    %v537 = vpack.c.b16 %v469, %v467
    %v538 = vpack.c.b16 %v472, %v470
    %v539 = vpack.c.b16 %v473, %v471
    %v540 = vpack.c.b16 %v476, %v474
    %v541 = vpack.c.b16 %v477, %v475
    %606 = vmatprep.subr.bf16.mxu0 %v493
    %607 = vmatpush1.bf16.msra.mxu0 %v492
    %608 = vmatprep.subr.bf16.mxu0 %v491
    %609 = vmatpush1.bf16.msra.mxu0 %v490
    %610 = vmatprep.subr.bf16.mxu0 %v489
    %611 = vmatpush1.bf16.msra.mxu0 %v488
    %612 = vmatprep.subr.bf16.mxu0 %v487
    %613 = vmatpush1.bf16.msra.mxu0 %v486
    %614 = vmatprep.subr.bf16.mxu0 %v485
    %615 = vmatpush1.bf16.msra.mxu0 %v484
    %616 = vmatprep.subr.bf16.mxu0 %v483
    %617 = vmatpush1.bf16.msra.mxu0 %v482
    %618 = vmatprep.subr.bf16.mxu0 %v481
    %619 = vmatpush1.bf16.msra.mxu0 %v480
    %620 = vmatprep.subr.bf16.mxu0 %v479
    %621 = vmatpush1.bf16.msra.mxu0 %v478
    %622 = vmatprep.subr.bf16.mxu0 %v509
    %623 = vmatpush2.bf16.msra.mxu0 %v508
    %624 = vmatprep.subr.bf16.mxu0 %v507
    %625 = vmatpush2.bf16.msra.mxu0 %v506
    %626 = vmatprep.subr.bf16.mxu0 %v505
    %627 = vmatpush2.bf16.msra.mxu0 %v504
    %628 = vmatprep.subr.bf16.mxu0 %v503
    %629 = vmatpush2.bf16.msra.mxu0 %v502
    %630 = vmatprep.subr.bf16.mxu0 %v501
    %631 = vmatpush2.bf16.msra.mxu0 %v500
    %632 = vmatprep.subr.bf16.mxu0 %v499
    %633 = vmatpush2.bf16.msra.mxu0 %v498
    %634 = vmatprep.subr.bf16.mxu0 %v497
    %635 = vmatpush2.bf16.msra.mxu0 %v496
    %636 = vmatprep.subr.bf16.mxu0 %v495
    %637 = vmatpush2.bf16.msra.mxu0 %v494
    %638 = vmatprep.mubr.bf16.mxu0 %v207
    %639 = vmatmul.mubr.bf16.gmra.mxu0 %v206
    %v640 = vpop.f32.mrf.mxu0
    %v641 = vadd.f32 %v279, %v640
    %v642 = vpop.f32.mrf.mxu0
    %v643 = vadd.f32 %v283, %v642
    %v644 = vpop.f32.mrf.mxu0
    %v645 = vpop.f32.mrf.mxu0
    %646 = vdwg.mxu0
    %647 = vmatprep.subr.bf16.mxu0 %v525
    %648 = vmatpush1.bf16.msra.mxu0 %v524
    %649 = vmatprep.subr.bf16.mxu0 %v523
    %650 = vmatpush1.bf16.msra.mxu0 %v522
    %651 = vmatprep.subr.bf16.mxu0 %v521
    %652 = vmatpush1.bf16.msra.mxu0 %v520
    %653 = vmatprep.subr.bf16.mxu0 %v519
    %654 = vmatpush1.bf16.msra.mxu0 %v518
    %655 = vmatprep.subr.bf16.mxu0 %v517
    %656 = vmatpush1.bf16.msra.mxu0 %v516
    %657 = vmatprep.subr.bf16.mxu0 %v515
    %658 = vmatpush1.bf16.msra.mxu0 %v514
    %659 = vmatprep.subr.bf16.mxu0 %v513
    %660 = vmatpush1.bf16.msra.mxu0 %v512
    %661 = vmatprep.subr.bf16.mxu0 %v511
    %662 = vmatpush1.bf16.msra.mxu0 %v510
    %663 = vmatprep.subr.bf16.mxu0 %v541
    %664 = vmatpush2.bf16.msra.mxu0 %v540
    %665 = vmatprep.subr.bf16.mxu0 %v539
    %666 = vmatpush2.bf16.msra.mxu0 %v538
    %667 = vmatprep.subr.bf16.mxu0 %v537
    %668 = vmatpush2.bf16.msra.mxu0 %v536
    %669 = vmatprep.subr.bf16.mxu0 %v535
    %670 = vmatpush2.bf16.msra.mxu0 %v534
    %671 = vmatprep.subr.bf16.mxu0 %v533
    %672 = vmatpush2.bf16.msra.mxu0 %v532
    %673 = vmatprep.subr.bf16.mxu0 %v531
    %674 = vmatpush2.bf16.msra.mxu0 %v530
    %675 = vmatprep.subr.bf16.mxu0 %v529
    %676 = vmatpush2.bf16.msra.mxu0 %v528
    %677 = vmatprep.subr.bf16.mxu0 %v527
    %678 = vmatpush2.bf16.msra.mxu0 %v526
    %679 = vmatprep.mubr.bf16.mxu0 %v209
    %680 = vmatmul.mubr.bf16.gmra.mxu0 %v208
    %v681 = vpop.f32.mrf.mxu0
    %v682 = vadd.f32 %v641, %v681
    %v683 = vpop.f32.mrf.mxu0
    %v684 = vadd.f32 %v643, %v683
    %v685 = vpop.f32.mrf.mxu0
    %v686 = vpop.f32.mrf.mxu0
    %687 = vdwg.mxu0
    %v688 = vmax.f32 %v682, 0.0
    %v689 = vmax.f32 %v684, 0.0
    %v690 = vld [vmem:[%s5] sm:$0x3]
    %v692 = vlaneseq
    %v693 = vshrl.u32 %v692, 7
    %v694 = vsub.s32 0, %v693
    %v695 = vrot.slane %v690, %v694
    %v696 = vlaneseq
    %v697 = vshrl.u32 %v696, 7
    %v698 = vsub.s32 1, %v697
    %v699 = vrot.slane %v690, %v698
    %v702 = vmul.f32 %v688, %v695
    %v703 = vmul.f32 %v689, %v699
    %v704 = vadd.f32 %v702, %v703
    %705 = vadd.xlane.f32.xlu0 %v704
    %v706 = vpop.xlane.xlu0 %705
    %v707 = vld [vmem:[#allocation2] sm:$0x1]
    %v709 = vlaneseq
    %v710 = vshrl.u32 %v709, 7
    %v711 = vsub.s32 0, %v710
    %v712 = vrot.slane %v707, %v711
    %v714 = vadd.f32 %v706, %v712
    %vm715 = vcmask 7168
    %716 = vst.msk [vmem:[%s7] sm:$0xff] %vm715, %v714
    // Predicated region
    $region42: #{tpu_custom_call.1} parent=1 // pred_check
      _
    $region43: #{tpu_custom_call.1} parent=1 // pred_check_branch
      %718 = sbr.rel (0) target = $region45
    $region44: #{tpu_custom_call.1} parent=1 // pred_region
      _
    $region45: #{tpu_custom_call.1} parent=1 // pred_fallthru
      _
    // Predicated region
    $region46: #{tpu_custom_call.1} parent=1 // pred_check
      _
    $region47: #{tpu_custom_call.1} parent=1 // pred_check_branch
      %720 = sbr.rel (0) target = $region49
    $region48: #{tpu_custom_call.1} parent=1 // pred_region
      _
    $region49: #{tpu_custom_call.1} parent=1 // pred_fallthru
      _
    %721 = vsyncpa [#allocation4], 1
    %722 = vsyncpa [#allocation6], 1

</llo_original>
